<compile_context>
chip_gen: v7x
topology: tpu7x:2x2x1
jax: 0.10.0
libtpu: 0.0.40
codegen_flags: <defaults>
</compile_context>

<pallas_src>
import functools
import math

import jax
import jax.numpy as jnp
from jax.experimental import pallas as pl
from jax.experimental.pallas import tpu as pltpu

LANE = 128


def _round_up(x, m):
    return ((x + m - 1) // m) * m


def _gcn_body(adj, x, w1, w2p, out_size):
    """Shared per-graph math. Returns (1, out_pad) log-probs (pad lanes = -inf).

    adj: (N, N)   x: (N, in)   w1: (in, hid)   w2p: (hid, out_pad)
    """
    n = adj.shape[0]

    # layer 1: relu(A X W1)  -- MXU matmuls, f32 accumulate
    ax = jnp.dot(adj, x, preferred_element_type=jnp.float32)
    h1 = jnp.maximum(jnp.dot(ax, w1, preferred_element_type=jnp.float32), 0.0)
    # dropout(p=0.0) is identity in train and eval -> no-op

    # layer 2 with the mean folded in:
    #   mean_rows(A H1 W2) = ((1/N) * ones(1,N) @ A) @ H1 @ W2
    r = jnp.sum(adj, axis=0, keepdims=True) * (1.0 / n)           # (1, N)
    rh1 = jnp.dot(r, h1, preferred_element_type=jnp.float32)      # (1, hid)
    m = jnp.dot(rh1, w2p, preferred_element_type=jnp.float32)     # (1, out_pad)

    # eval-mode LogSoftmax over the real (unpadded) lanes only
    out_pad = m.shape[-1]
    lane = jax.lax.broadcasted_iota(jnp.int32, (1, out_pad), 1)
    m = jnp.where(lane < out_size, m, jnp.float32(-jnp.inf))
    mx = jnp.max(m, axis=-1, keepdims=True)
    shifted = m - mx
    lse = jnp.log(jnp.sum(jnp.exp(shifted), axis=-1, keepdims=True))
    return shifted - lse


def gcn_kernel(adj_ref, inp_ref, w1_ref, w2_ref, out_ref, *, out_size):
    out_ref[...] = _gcn_body(
        adj_ref[...], inp_ref[...], w1_ref[...], w2_ref[...], out_size
    ).astype(out_ref.dtype)


def gcn_treebank_forward(adj, inp, w1, w2):
    """Single-graph forward. adj: (N,N), inp: (N,in), w1: (in,hid), w2: (hid,out)."""
    hid, out_sz = w2.shape
    out_pad = _round_up(out_sz, LANE)
    w2p = jnp.pad(w2, ((0, 0), (0, out_pad - out_sz)))

    vmem = pltpu.MemorySpace.VMEM
    out = pl.pallas_call(
        functools.partial(gcn_kernel, out_size=out_sz),
        out_shape=jax.ShapeDtypeStruct((1, out_pad), jnp.float32),
        in_specs=[pl.BlockSpec(memory_space=vmem)] * 4,
        out_specs=pl.BlockSpec(memory_space=vmem),
    )(adj, inp, w1, w2p)
    return out[:, :out_sz]


def gcn_treebank_forward_batched(adj, inp, w1, w2):
    """Batched forward. adj: (B,N,N), inp: (B,N,in). Returns (B,1,out)."""
    b, n, _ = adj.shape
    in_sz = inp.shape[-1]
    hid, out_sz = w2.shape
    out_pad = _round_up(out_sz, LANE)
    w2p = jnp.pad(w2, ((0, 0), (0, out_pad - out_sz)))

    out = pl.pallas_call(
        functools.partial(gcn_kernel, out_size=out_sz),
        out_shape=jax.ShapeDtypeStruct((b, 1, out_pad), jnp.float32),
        grid=(b,),
        in_specs=[
            pl.BlockSpec((None, n, n), lambda i: (i, 0, 0)),
            pl.BlockSpec((None, n, in_sz), lambda i: (i, 0, 0)),
            # constant block index across the batch axis -> weights stay
            # resident in VMEM, no per-graph re-DMA
            pl.BlockSpec((in_sz, hid), lambda i: (0, 0)),
            pl.BlockSpec((hid, out_pad), lambda i: (0, 0)),
        ],
        out_specs=pl.BlockSpec((None, 1, out_pad), lambda i: (i, 0, 0)),
        compiler_params=pltpu.CompilerParams(
            dimension_semantics=("parallel",)),
    )(adj, inp, w1, w2p)
    return out[:, :, :out_sz]


def kaiming_uniform_like_torch(key, shape):
    # nn.init.kaiming_uniform_(w, a=sqrt(5)) on a 2-D (in, out) tensor:
    # gain = sqrt(2/(1+a^2)) = sqrt(1/3); fan_in = shape[1] (PyTorch's
    # _calculate_fan_in_and_fan_out uses size(1) for 2-D tensors);
    # bound = gain * sqrt(3/fan_in) = 1/sqrt(fan_in)
    fan_in = shape[1]
    bound = 1.0 / math.sqrt(fan_in)
    return jax.random.uniform(key, shape, jnp.float32, -bound, bound)


def reference_forward(adj, inp, w1, w2):
    h1 = jnp.maximum(adj @ inp @ w1, 0.0)
    h2 = adj @ h1 @ w2
    m = jnp.mean(h2, axis=0, keepdims=True)
    return jax.nn.log_softmax(m, axis=-1)


if __name__ == "__main__":
    key = jax.random.PRNGKey(0)
    k_adj, k_inp, k_w1, k_w2 = jax.random.split(key, 4)

    batch = 4
    num_vertices = 8
    input_size = 32
    hidden_size = 32
    output_size = 16

    # Batch of symmetric, self-looped, row-normalized adjacencies.
    a = jax.random.uniform(
        k_adj, (batch, num_vertices, num_vertices), jnp.float32)
    a = (a + jnp.swapaxes(a, -1, -2)) * 0.5 + jnp.eye(
        num_vertices, dtype=jnp.float32)
    adj_b = a / jnp.sum(a, axis=-1, keepdims=True)

    inp_b = jax.random.normal(
        k_inp, (batch, num_vertices, input_size), jnp.float32)
    w1 = kaiming_uniform_like_torch(k_w1, (input_size, hidden_size))
    w2 = kaiming_uniform_like_torch(k_w2, (hidden_size, output_size))

    # --- single-graph path (gridless, full-array VMEM blocks) ---
    out1 = gcn_treebank_forward(adj_b[0], inp_b[0], w1, w2)
    out1 = jax.block_until_ready(out1)
    ref1 = reference_forward(adj_b[0], inp_b[0], w1, w2)
    assert out1.shape == (1, output_size)
    assert jnp.allclose(out1, ref1, atol=1e-4, rtol=1e-4), (out1, ref1)

    # --- batched path (grid over B, parallel axis, resident weights) ---
    out_b = gcn_treebank_forward_batched(adj_b, inp_b, w1, w2)
    out_b = jax.block_until_ready(out_b)
    ref_b = jax.vmap(reference_forward, in_axes=(0, 0, None, None))(
        adj_b, inp_b, w1, w2)
    assert out_b.shape == (batch, 1, output_size)
    assert jnp.allclose(out_b, ref_b, atol=1e-4, rtol=1e-4), (out_b, ref_b)

    print("KERNEL_OK")
</pallas_src>

<mosaic_0001>
module attributes {stable_mosaic.version = 11 : i64} {
  func.func @gcn_kernel(%arg0: memref<8x8xf32, #tpu.memory_space<vmem>>, %arg1: memref<8x32xf32, #tpu.memory_space<vmem>>, %arg2: memref<32x32xf32, #tpu.memory_space<vmem>>, %arg3: memref<32x128xf32, #tpu.memory_space<vmem>>, %arg4: memref<1x128xf32, #tpu.memory_space<vmem>>) attributes {dimension_semantics = [], scalar_prefetch = 0 : i64, scratch_operands = 0 : i64, tpu.core_type = #tpu.core_type<tc>} {
    %c0 = arith.constant 0 : index
    %c0_0 = arith.constant 0 : index
    %0 = vector.load %arg0[%c0, %c0_0] : memref<8x8xf32, #tpu.memory_space<vmem>>, vector<8x8xf32>
    %c0_1 = arith.constant 0 : index
    %c0_2 = arith.constant 0 : index
    %1 = vector.load %arg1[%c0_1, %c0_2] : memref<8x32xf32, #tpu.memory_space<vmem>>, vector<8x32xf32>
    %c0_3 = arith.constant 0 : index
    %c0_4 = arith.constant 0 : index
    %2 = vector.load %arg2[%c0_3, %c0_4] : memref<32x32xf32, #tpu.memory_space<vmem>>, vector<32x32xf32>
    %c0_5 = arith.constant 0 : index
    %c0_6 = arith.constant 0 : index
    %3 = vector.load %arg3[%c0_5, %c0_6] : memref<32x128xf32, #tpu.memory_space<vmem>>, vector<32x128xf32>
    %cst = arith.constant dense<0.000000e+00> : vector<8x32xf32>
    %4 = tpu.matmul %0, %1, %cst {dimension_numbers = #tpu.dot_dimension_numbers<[1], [0], [0], [1], [0, 0, 1, 1], [], []>} : vector<8x8xf32>, vector<8x32xf32>, vector<8x32xf32> -> vector<8x32xf32>
    %cst_7 = arith.constant dense<0.000000e+00> : vector<8x32xf32>
    %5 = tpu.matmul %4, %2, %cst_7 {dimension_numbers = #tpu.dot_dimension_numbers<[1], [0], [0], [1], [0, 0, 1, 1], [], []>} : vector<8x32xf32>, vector<32x32xf32>, vector<8x32xf32> -> vector<8x32xf32>
    %cst_8 = arith.constant 0.000000e+00 : f32
    %6 = vector.broadcast %cst_8 : f32 to vector<8x32xf32>
    %7 = arith.maximumf %5, %6 : vector<8x32xf32>
    %cst_9 = arith.constant dense<0.000000e+00> : vector<8xf32>
    %8 = vector.multi_reduction <add>, %0, %cst_9 [0] : vector<8x8xf32> to vector<8xf32>
    %9 = vector.shape_cast %8 : vector<8xf32> to vector<1x8xf32>
    %cst_10 = arith.constant 1.250000e-01 : f32
    %10 = vector.broadcast %cst_10 : f32 to vector<1x8xf32>
    %11 = arith.mulf %9, %10 : vector<1x8xf32>
    %cst_11 = arith.constant dense<0.000000e+00> : vector<1x32xf32>
    %12 = tpu.matmul %11, %7, %cst_11 {dimension_numbers = #tpu.dot_dimension_numbers<[1], [0], [0], [1], [0, 0, 1, 1], [], []>} : vector<1x8xf32>, vector<8x32xf32>, vector<1x32xf32> -> vector<1x32xf32>
    %cst_12 = arith.constant dense<0.000000e+00> : vector<1x128xf32>
    %13 = tpu.matmul %12, %3, %cst_12 {dimension_numbers = #tpu.dot_dimension_numbers<[1], [0], [0], [1], [0, 0, 1, 1], [], []>} : vector<1x32xf32>, vector<32x128xf32>, vector<1x128xf32> -> vector<1x128xf32>
    %14 = tpu.iota {dimensions = array<i32: 1>} : vector<1x128xi32>
    %c16_i32 = arith.constant 16 : i32
    %15 = vector.broadcast %c16_i32 : i32 to vector<1x128xi32>
    %16 = arith.cmpi slt, %14, %15 : vector<1x128xi32>
    %cst_13 = arith.constant 0xFF800000 : f32
    %17 = vector.broadcast %cst_13 : f32 to vector<1x128xf32>
    %18 = arith.select %16, %13, %17 : vector<1x128xi1>, vector<1x128xf32>
    %cst_14 = arith.constant dense<0xFF800000> : vector<1xf32>
    %19 = vector.multi_reduction <maximumf>, %18, %cst_14 [1] : vector<1x128xf32> to vector<1xf32>
    %20 = vector.shape_cast %19 : vector<1xf32> to vector<1x1xf32>
    %21 = vector.broadcast %20 : vector<1x1xf32> to vector<1x128xf32>
    %22 = arith.subf %18, %21 : vector<1x128xf32>
    %23 = math.exp %22 : vector<1x128xf32>
    %cst_15 = arith.constant dense<0.000000e+00> : vector<1xf32>
    %24 = vector.multi_reduction <add>, %23, %cst_15 [1] : vector<1x128xf32> to vector<1xf32>
    %25 = vector.shape_cast %24 : vector<1xf32> to vector<1x1xf32>
    %26 = math.log %25 : vector<1x1xf32>
    %27 = vector.broadcast %26 : vector<1x1xf32> to vector<1x128xf32>
    %28 = arith.subf %22, %27 : vector<1x128xf32>
    %c0_16 = arith.constant 0 : index
    %c0_17 = arith.constant 0 : index
    %29 = vector.load %arg4[%c0_16, %c0_17] : memref<1x128xf32, #tpu.memory_space<vmem>>, vector<1x128xf32>
    tpu.vector_store %arg4[%c0_16, %c0_17], %28 {strides = array<i32>} : memref<1x128xf32, #tpu.memory_space<vmem>>, vector<1x128xf32>,
    return
  }
}

</mosaic_0001>

<llo_original>
// kernel: tpu_custom_call.1
$region0: #{tpu_custom_call.1}
  #allocation0 [shape = 'u32[]', space=smem, size = 0x4, offset = 0x4, fixed_abs, tag = 'smem constant byte address 0x4 - core index']
  #allocation1 [shape = 'u32[144,128]{1,0:T(1,128)}', space=vmem, size = 0x12000, scoped, tag = 'internal scratch']
  %s0 = inlined_call_operand.hbm [shape: f32[8,8], index: 0, kind: input, shape index: {}]
  %s1 = inlined_call_operand.hbm [shape: f32[8,32], index: 1, kind: input, shape index: {}]
  %s2 = inlined_call_operand.hbm [shape: f32[32,32], index: 2, kind: input, shape index: {}]
  %s3 = inlined_call_operand.hbm [shape: f32[32,128], index: 3, kind: input, shape index: {}]
  %s4 = inlined_call_operand.hbm [shape: f32[1,128], index: 4, kind: output, shape index: {}]
  %s5 = sld [smem:[#allocation0]]
  $region42: #{tpu_custom_call.1} parent=0
    _
  %s7 = ssub.s32 1, %s5
  %s8 = scalar_select 0, %s7, %s5
  $region1: #{tpu_custom_call.1} parent=0
    #allocation2 [shape = 'u8[4096]{0}', space=vmem, size = 0x1000, scoped, tag = 'input window, operand 0, single buffered']
    #allocation3 [shape = 's32[1]{0}', space=sflag, size = 0x4, scoped, tag = 'scoped memory for tpu_custom_call.1']
    #allocation4 [shape = 's32[1]{0}', space=sflag, size = 0x4, scoped, tag = 'scoped memory for tpu_custom_call.1']
    #allocation5 [shape = 'u8[4096]{0}', space=vmem, size = 0x1000, scoped, tag = 'input window, operand 1, single buffered']
    #allocation6 [shape = 's32[1]{0}', space=sflag, size = 0x4, scoped, tag = 'scoped memory for tpu_custom_call.1']
    #allocation7 [shape = 'u8[16384]{0}', space=vmem, size = 0x4000, scoped, tag = 'input window, operand 2, single buffered']
    #allocation8 [shape = 'u8[16384]{0}', space=vmem, size = 0x4000, scoped, tag = 'input window, operand 3, single buffered']
    #allocation9 [shape = 's32[1]{0}', space=sflag, size = 0x4, scoped, tag = 'scoped memory for tpu_custom_call.1']
    #allocation10 [shape = 'u8[512]{0}', space=vmem, size = 0x400, scoped, tag = 'output window, operand 0, single buffered']
    %9 = vsyncpa [#allocation3], 0
    %10 = vsyncpa [#allocation6], 0
    %11 = vsyncpa [#allocation9], 0
    %12 = vsyncpa [#allocation4], 0
    // Predicated region
    $region2: #{tpu_custom_call.1} parent=1 // pred_check
      _
    $region3: #{tpu_custom_call.1} parent=1 // pred_check_branch
      %14 = sbr.rel (0) target = $region5
    $region4: #{tpu_custom_call.1} parent=1 // pred_region
      %s16 = ssub.s32 128, 128
      %17 = vsyncadd [#allocation3], %s16
      %s19 = sshll.u32 [#allocation2], 4
      %s20 = int_to_ptr.vmem [resolvable:$true] %s19
      %22 = dma.hbm_to_vmem [thread:$0]  %s0, 128, %s20, [#allocation3]
    $region5: #{tpu_custom_call.1} parent=1 // pred_fallthru
      _
    // Predicated region
    $region6: #{tpu_custom_call.1} parent=1 // pred_check
      _
    $region7: #{tpu_custom_call.1} parent=1 // pred_check_branch
      %24 = sbr.rel (0) target = $region9
    $region8: #{tpu_custom_call.1} parent=1 // pred_region
      %s26 = ssub.s32 128, 128
      %27 = vsyncadd [#allocation6], %s26
      %s29 = sshll.u32 [#allocation5], 4
      %s30 = int_to_ptr.vmem [resolvable:$true] %s29
      %32 = dma.hbm_to_vmem [thread:$0]  %s1, 128, %s30, [#allocation6]
    $region9: #{tpu_custom_call.1} parent=1 // pred_fallthru
      _
    // Predicated region
    $region10: #{tpu_custom_call.1} parent=1 // pred_check
      _
    $region11: #{tpu_custom_call.1} parent=1 // pred_check_branch
      %34 = sbr.rel (0) target = $region13
    $region12: #{tpu_custom_call.1} parent=1 // pred_region
      %s36 = ssub.s32 512, 512
      %37 = vsyncadd [#allocation6], %s36
      %s38 = sshll.u32 [#allocation7], 4
      %s39 = int_to_ptr.vmem [resolvable:$true] %s38
      %44 = dma.hbm_to_vmem [thread:$0]  %s2, 512, %s39, [#allocation6], 128, 128, 8
    $region13: #{tpu_custom_call.1} parent=1 // pred_fallthru
      _
    // Predicated region
    $region14: #{tpu_custom_call.1} parent=1 // pred_check
      _
    $region15: #{tpu_custom_call.1} parent=1 // pred_check_branch
      %46 = sbr.rel (0) target = $region17
    $region16: #{tpu_custom_call.1} parent=1 // pred_region
      %s48 = ssub.s32 512, 512
      %49 = vsyncadd [#allocation9], %s48
      %s50 = sshll.u32 [#allocation8], 4
      %s51 = int_to_ptr.vmem [resolvable:$true] %s50
      %56 = dma.hbm_to_vmem [thread:$0]  %s3, 512, %s51, [#allocation9], 128, 128, 8
    $region17: #{tpu_custom_call.1} parent=1 // pred_fallthru
      _
    // Predicated region
    $region18: #{tpu_custom_call.1} parent=1 // pred_check
      _
    $region19: #{tpu_custom_call.1} parent=1 // pred_check_branch
      %58 = sbr.rel (0) target = $region21
    $region20: #{tpu_custom_call.1} parent=1 // pred_region
      %59 = dma.done [#allocation3], 128
    $region21: #{tpu_custom_call.1} parent=1 // pred_fallthru
      _
    // Predicated region
    $region22: #{tpu_custom_call.1} parent=1 // pred_check
      _
    $region23: #{tpu_custom_call.1} parent=1 // pred_check_branch
      %61 = sbr.rel (0) target = $region25
    $region24: #{tpu_custom_call.1} parent=1 // pred_region
      %62 = dma.done [#allocation6], 128
    $region25: #{tpu_custom_call.1} parent=1 // pred_fallthru
      _
    // Predicated region
    $region26: #{tpu_custom_call.1} parent=1 // pred_check
      _
    $region27: #{tpu_custom_call.1} parent=1 // pred_check_branch
      %64 = sbr.rel (0) target = $region29
    $region28: #{tpu_custom_call.1} parent=1 // pred_region
      %65 = dma.done [#allocation6], 512
    $region29: #{tpu_custom_call.1} parent=1 // pred_fallthru
      _
    // Predicated region
    $region30: #{tpu_custom_call.1} parent=1 // pred_check
      _
    $region31: #{tpu_custom_call.1} parent=1 // pred_check_branch
      %67 = sbr.rel (0) target = $region33
    $region32: #{tpu_custom_call.1} parent=1 // pred_region
      %68 = dma.done [#allocation9], 512
    $region33: #{tpu_custom_call.1} parent=1 // pred_fallthru
      _
    %v69 = vld [vmem:[#allocation2] sm:$0xff]
    %v70 = vld [vmem:[#allocation5] sm:$0xff]
    %v71 = vld [vmem:[#allocation7] sm:$0xff]
    %v72 = vld [vmem:[#allocation7 + $0x8] sm:$0xff]
    %v73 = vld [vmem:[#allocation7 + $0x10] sm:$0xff]
    %v74 = vld [vmem:[#allocation7 + $0x18] sm:$0xff]
    %v75 = vld [vmem:[#allocation8] sm:$0xff]
    %v76 = vld [vmem:[#allocation8 + $0x8] sm:$0xff]
    %v77 = vld [vmem:[#allocation8 + $0x10] sm:$0xff]
    %v78 = vld [vmem:[#allocation8 + $0x18] sm:$0xff]
    %vm79 = vcmask 64512
    %v81 = vsel %vm79, %v69, 0
    %83 = vmatprep.subr.mxu0 0.0
    %84 = vmatpush1.msra.mxu0 %v70
    %85 = vmatprep.subr.mxu0 0.0
    %86 = vmatpush1.msra.mxu0 0.0
    %87 = vmatprep.subr.mxu0 0.0
    %88 = vmatpush1.msra.mxu0 0.0
    %89 = vmatprep.subr.mxu0 0.0
    %90 = vmatpush1.msra.mxu0 0.0
    %91 = vmatprep.subr.mxu0 0.0
    %92 = vmatpush1.msra.mxu0 0.0
    %93 = vmatprep.subr.mxu0 0.0
    %94 = vmatpush1.msra.mxu0 0.0
    %95 = vmatprep.subr.mxu0 0.0
    %96 = vmatpush1.msra.mxu0 0.0
    %97 = vmatprep.subr.mxu0 0.0
    %98 = vmatpush1.msra.mxu0 0.0
    %99 = vmatprep.subr.mxu0 0.0
    %100 = vmatpush1.msra.mxu0 0.0
    %101 = vmatprep.subr.mxu0 0.0
    %102 = vmatpush1.msra.mxu0 0.0
    %103 = vmatprep.subr.mxu0 0.0
    %104 = vmatpush1.msra.mxu0 0.0
    %105 = vmatprep.subr.mxu0 0.0
    %106 = vmatpush1.msra.mxu0 0.0
    %107 = vmatprep.subr.mxu0 0.0
    %108 = vmatpush1.msra.mxu0 0.0
    %109 = vmatprep.subr.mxu0 0.0
    %110 = vmatpush1.msra.mxu0 0.0
    %111 = vmatprep.subr.mxu0 0.0
    %112 = vmatpush1.msra.mxu0 0.0
    %113 = vmatprep.subr.mxu0 0.0
    %114 = vmatpush1.msra.mxu0 0.0
    %115 = vmatprep.subr.mxu0 0.0
    %116 = vmatpush1.msra.mxu0 0.0
    %117 = vmatprep.subr.mxu0 0.0
    %118 = vmatpush1.msra.mxu0 0.0
    %119 = vmatprep.subr.mxu0 0.0
    %120 = vmatpush1.msra.mxu0 0.0
    %121 = vmatprep.subr.mxu0 0.0
    %122 = vmatpush1.msra.mxu0 0.0
    %123 = vmatprep.subr.mxu0 0.0
    %124 = vmatpush1.msra.mxu0 0.0
    %125 = vmatprep.subr.mxu0 0.0
    %126 = vmatpush1.msra.mxu0 0.0
    %127 = vmatprep.subr.mxu0 0.0
    %128 = vmatpush1.msra.mxu0 0.0
    %129 = vmatprep.subr.mxu0 0.0
    %130 = vmatpush1.msra.mxu0 0.0
    %131 = vmatprep.subr.mxu0 0.0
    %132 = vmatpush1.msra.mxu0 0.0
    %133 = vmatprep.subr.mxu0 0.0
    %134 = vmatpush1.msra.mxu0 0.0
    %135 = vmatprep.subr.mxu0 0.0
    %136 = vmatpush1.msra.mxu0 0.0
    %137 = vmatprep.subr.mxu0 0.0
    %138 = vmatpush1.msra.mxu0 0.0
    %139 = vmatprep.subr.mxu0 0.0
    %140 = vmatpush1.msra.mxu0 0.0
    %141 = vmatprep.subr.mxu0 0.0
    %142 = vmatpush1.msra.mxu0 0.0
    %143 = vmatprep.subr.mxu0 0.0
    %144 = vmatpush1.msra.mxu0 0.0
    %145 = vmatprep.subr.mxu0 0.0
    %146 = vmatpush1.msra.mxu0 0.0
    %147 = vmatprep.mubr.f32.mxu0 0.0
    %148 = vmatmul.mubr.f32.gmra.mrb[0].mxu0 %v81
    %v149 = vpop.f32.mrb[0].mxu0
    %v150 = vadd.f32 0.0, %v149
    %v151 = vpop.f32.mrb[0].mxu0
    %152 = vdwg.mxu0
    %vm153 = vcmask 261120
    %v155 = vsel %vm153, %v150, 0
    %157 = vmatprep.subr.mxu0 0.0
    %158 = vmatpush1.msra.mxu0 %v71
    %159 = vmatprep.subr.mxu0 0.0
    %160 = vmatpush1.msra.mxu0 %v72
    %161 = vmatprep.subr.mxu0 0.0
    %162 = vmatpush1.msra.mxu0 %v73
    %163 = vmatprep.subr.mxu0 0.0
    %164 = vmatpush1.msra.mxu0 %v74
    %165 = vmatprep.subr.mxu0 0.0
    %166 = vmatpush1.msra.mxu0 0.0
    %167 = vmatprep.subr.mxu0 0.0
    %168 = vmatpush1.msra.mxu0 0.0
    %169 = vmatprep.subr.mxu0 0.0
    %170 = vmatpush1.msra.mxu0 0.0
    %171 = vmatprep.subr.mxu0 0.0
    %172 = vmatpush1.msra.mxu0 0.0
    %173 = vmatprep.subr.mxu0 0.0
    %174 = vmatpush1.msra.mxu0 0.0
    %175 = vmatprep.subr.mxu0 0.0
    %176 = vmatpush1.msra.mxu0 0.0
    %177 = vmatprep.subr.mxu0 0.0
    %178 = vmatpush1.msra.mxu0 0.0
    %179 = vmatprep.subr.mxu0 0.0
    %180 = vmatpush1.msra.mxu0 0.0
    %181 = vmatprep.subr.mxu0 0.0
    %182 = vmatpush1.msra.mxu0 0.0
    %183 = vmatprep.subr.mxu0 0.0
    %184 = vmatpush1.msra.mxu0 0.0
    %185 = vmatprep.subr.mxu0 0.0
    %186 = vmatpush1.msra.mxu0 0.0
    %187 = vmatprep.subr.mxu0 0.0
    %188 = vmatpush1.msra.mxu0 0.0
    %189 = vmatprep.subr.mxu0 0.0
    %190 = vmatpush1.msra.mxu0 0.0
    %191 = vmatprep.subr.mxu0 0.0
    %192 = vmatpush1.msra.mxu0 0.0
    %193 = vmatprep.subr.mxu0 0.0
    %194 = vmatpush1.msra.mxu0 0.0
    %195 = vmatprep.subr.mxu0 0.0
    %196 = vmatpush1.msra.mxu0 0.0
    %197 = vmatprep.subr.mxu0 0.0
    %198 = vmatpush1.msra.mxu0 0.0
    %199 = vmatprep.subr.mxu0 0.0
    %200 = vmatpush1.msra.mxu0 0.0
    %201 = vmatprep.subr.mxu0 0.0
    %202 = vmatpush1.msra.mxu0 0.0
    %203 = vmatprep.subr.mxu0 0.0
    %204 = vmatpush1.msra.mxu0 0.0
    %205 = vmatprep.subr.mxu0 0.0
    %206 = vmatpush1.msra.mxu0 0.0
    %207 = vmatprep.subr.mxu0 0.0
    %208 = vmatpush1.msra.mxu0 0.0
    %209 = vmatprep.subr.mxu0 0.0
    %210 = vmatpush1.msra.mxu0 0.0
    %211 = vmatprep.subr.mxu0 0.0
    %212 = vmatpush1.msra.mxu0 0.0
    %213 = vmatprep.subr.mxu0 0.0
    %214 = vmatpush1.msra.mxu0 0.0
    %215 = vmatprep.subr.mxu0 0.0
    %216 = vmatpush1.msra.mxu0 0.0
    %217 = vmatprep.subr.mxu0 0.0
    %218 = vmatpush1.msra.mxu0 0.0
    %219 = vmatprep.subr.mxu0 0.0
    %220 = vmatpush1.msra.mxu0 0.0
    %221 = vmatprep.mubr.f32.mxu0 0.0
    %222 = vmatmul.mubr.f32.gmra.mrb[0].mxu0 %v155
    %v223 = vpop.f32.mrb[0].mxu0
    %v224 = vadd.f32 0.0, %v223
    %v225 = vpop.f32.mrb[0].mxu0
    %226 = vdwg.mxu0
    %v227 = vmax.f32 %v224, 0.0
    %v228 = vsel %vm79, %v69, 0.0
    %v229 = vrot.slane %v228, 4
    %v230 = vadd.f32 %v228, %v229
    %v231 = vrot.slane %v230, 2
    %v232 = vadd.f32 %v230, %v231
    %v233 = vrot.slane %v232, 1
    %v234 = vadd.f32 %v232, %v233
    %v235 = vmul.f32 %v234, 0.125
    %v237 = vsel %vm79, %v235, 0
    %239 = vmatprep.subr.mxu0 0.0
    %240 = vmatpush1.msra.mxu0 %v227
    %241 = vmatprep.subr.mxu0 0.0
    %242 = vmatpush1.msra.mxu0 0.0
    %243 = vmatprep.subr.mxu0 0.0
    %244 = vmatpush1.msra.mxu0 0.0
    %245 = vmatprep.subr.mxu0 0.0
    %246 = vmatpush1.msra.mxu0 0.0
    %247 = vmatprep.subr.mxu0 0.0
    %248 = vmatpush1.msra.mxu0 0.0
    %249 = vmatprep.subr.mxu0 0.0
    %250 = vmatpush1.msra.mxu0 0.0
    %251 = vmatprep.subr.mxu0 0.0
    %252 = vmatpush1.msra.mxu0 0.0
    %253 = vmatprep.subr.mxu0 0.0
    %254 = vmatpush1.msra.mxu0 0.0
    %255 = vmatprep.subr.mxu0 0.0
    %256 = vmatpush1.msra.mxu0 0.0
    %257 = vmatprep.subr.mxu0 0.0
    %258 = vmatpush1.msra.mxu0 0.0
    %259 = vmatprep.subr.mxu0 0.0
    %260 = vmatpush1.msra.mxu0 0.0
    %261 = vmatprep.subr.mxu0 0.0
    %262 = vmatpush1.msra.mxu0 0.0
    %263 = vmatprep.subr.mxu0 0.0
    %264 = vmatpush1.msra.mxu0 0.0
    %265 = vmatprep.subr.mxu0 0.0
    %266 = vmatpush1.msra.mxu0 0.0
    %267 = vmatprep.subr.mxu0 0.0
    %268 = vmatpush1.msra.mxu0 0.0
    %269 = vmatprep.subr.mxu0 0.0
    %270 = vmatpush1.msra.mxu0 0.0
    %271 = vmatprep.subr.mxu0 0.0
    %272 = vmatpush1.msra.mxu0 0.0
    %273 = vmatprep.subr.mxu0 0.0
    %274 = vmatpush1.msra.mxu0 0.0
    %275 = vmatprep.subr.mxu0 0.0
    %276 = vmatpush1.msra.mxu0 0.0
    %277 = vmatprep.subr.mxu0 0.0
    %278 = vmatpush1.msra.mxu0 0.0
    %279 = vmatprep.subr.mxu0 0.0
    %280 = vmatpush1.msra.mxu0 0.0
    %281 = vmatprep.subr.mxu0 0.0
    %282 = vmatpush1.msra.mxu0 0.0
    %283 = vmatprep.subr.mxu0 0.0
    %284 = vmatpush1.msra.mxu0 0.0
    %285 = vmatprep.subr.mxu0 0.0
    %286 = vmatpush1.msra.mxu0 0.0
    %287 = vmatprep.subr.mxu0 0.0
    %288 = vmatpush1.msra.mxu0 0.0
    %289 = vmatprep.subr.mxu0 0.0
    %290 = vmatpush1.msra.mxu0 0.0
    %291 = vmatprep.subr.mxu0 0.0
    %292 = vmatpush1.msra.mxu0 0.0
    %293 = vmatprep.subr.mxu0 0.0
    %294 = vmatpush1.msra.mxu0 0.0
    %295 = vmatprep.subr.mxu0 0.0
    %296 = vmatpush1.msra.mxu0 0.0
    %297 = vmatprep.subr.mxu0 0.0
    %298 = vmatpush1.msra.mxu0 0.0
    %299 = vmatprep.subr.mxu0 0.0
    %300 = vmatpush1.msra.mxu0 0.0
    %301 = vmatprep.subr.mxu0 0.0
    %302 = vmatpush1.msra.mxu0 0.0
    %303 = vmatprep.mubr.f32.mxu0 0.0
    %304 = vmatmul.mubr.f32.gmra.mrb[0].mxu0 %v237
    %v305 = vpop.f32.mrb[0].mxu0
    %v306 = vadd.f32 0.0, %v305
    %v307 = vpop.f32.mrb[0].mxu0
    %308 = vdwg.mxu0
    %v310 = vsel %vm153, %v306, 0
    %312 = vmatprep.subr.mxu0 0.0
    %313 = vmatpush1.msra.mxu0 %v75
    %314 = vmatprep.subr.mxu0 0.0
    %315 = vmatpush1.msra.mxu0 %v76
    %316 = vmatprep.subr.mxu0 0.0
    %317 = vmatpush1.msra.mxu0 %v77
    %318 = vmatprep.subr.mxu0 0.0
    %319 = vmatpush1.msra.mxu0 %v78
    %320 = vmatprep.subr.mxu0 0.0
    %321 = vmatpush1.msra.mxu0 0.0
    %322 = vmatprep.subr.mxu0 0.0
    %323 = vmatpush1.msra.mxu0 0.0
    %324 = vmatprep.subr.mxu0 0.0
    %325 = vmatpush1.msra.mxu0 0.0
    %326 = vmatprep.subr.mxu0 0.0
    %327 = vmatpush1.msra.mxu0 0.0
    %328 = vmatprep.subr.mxu0 0.0
    %329 = vmatpush1.msra.mxu0 0.0
    %330 = vmatprep.subr.mxu0 0.0
    %331 = vmatpush1.msra.mxu0 0.0
    %332 = vmatprep.subr.mxu0 0.0
    %333 = vmatpush1.msra.mxu0 0.0
    %334 = vmatprep.subr.mxu0 0.0
    %335 = vmatpush1.msra.mxu0 0.0
    %336 = vmatprep.subr.mxu0 0.0
    %337 = vmatpush1.msra.mxu0 0.0
    %338 = vmatprep.subr.mxu0 0.0
    %339 = vmatpush1.msra.mxu0 0.0
    %340 = vmatprep.subr.mxu0 0.0
    %341 = vmatpush1.msra.mxu0 0.0
    %342 = vmatprep.subr.mxu0 0.0
    %343 = vmatpush1.msra.mxu0 0.0
    %344 = vmatprep.subr.mxu0 0.0
    %345 = vmatpush1.msra.mxu0 0.0
    %346 = vmatprep.subr.mxu0 0.0
    %347 = vmatpush1.msra.mxu0 0.0
    %348 = vmatprep.subr.mxu0 0.0
    %349 = vmatpush1.msra.mxu0 0.0
    %350 = vmatprep.subr.mxu0 0.0
    %351 = vmatpush1.msra.mxu0 0.0
    %352 = vmatprep.subr.mxu0 0.0
    %353 = vmatpush1.msra.mxu0 0.0
    %354 = vmatprep.subr.mxu0 0.0
    %355 = vmatpush1.msra.mxu0 0.0
    %356 = vmatprep.subr.mxu0 0.0
    %357 = vmatpush1.msra.mxu0 0.0
    %358 = vmatprep.subr.mxu0 0.0
    %359 = vmatpush1.msra.mxu0 0.0
    %360 = vmatprep.subr.mxu0 0.0
    %361 = vmatpush1.msra.mxu0 0.0
    %362 = vmatprep.subr.mxu0 0.0
    %363 = vmatpush1.msra.mxu0 0.0
    %364 = vmatprep.subr.mxu0 0.0
    %365 = vmatpush1.msra.mxu0 0.0
    %366 = vmatprep.subr.mxu0 0.0
    %367 = vmatpush1.msra.mxu0 0.0
    %368 = vmatprep.subr.mxu0 0.0
    %369 = vmatpush1.msra.mxu0 0.0
    %370 = vmatprep.subr.mxu0 0.0
    %371 = vmatpush1.msra.mxu0 0.0
    %372 = vmatprep.subr.mxu0 0.0
    %373 = vmatpush1.msra.mxu0 0.0
    %374 = vmatprep.subr.mxu0 0.0
    %375 = vmatpush1.msra.mxu0 0.0
    %376 = vmatprep.mubr.f32.mxu0 0.0
    %377 = vmatmul.mubr.f32.gmra.mrb[0].mxu0 %v310
    %v378 = vpop.f32.mrb[0].mxu0
    %v379 = vadd.f32 0.0, %v378
    %v380 = vpop.f32.mrb[0].mxu0
    %381 = vdwg.mxu0
    %v382 = vlaneseq
    %v383 = vand.u32 %v382, 127
    %vm384 = vcmp.lt.s32.totalorder %v383, 16
    %v385 = vsel %vm384, %v379, -inf
    %vm386 = vcmask 1040384
    %v387 = vsel %vm386, %v385, -inf
    %388 = vmax.xlane.f32.xlu0 %v387
    %v389 = vpop.xlane.xlu0 %388
    %v390 = vsub.f32 %v385, %v389
    %v391 = vmul.f32 %v390, 1.442695
    %v392 = vpow.pop %v391
    %v393 = vsel %vm386, %v392, 0.0
    %394 = vadd.xlane.f32.xlu0 %v393
    %v395 = vpop.xlane.xlu0 %394
    %v396 = vlog2.pop %v395
    %v397 = vmul.f32 %v396, 0.6931472
    %v398 = vsub.f32 %v390, %v397
    %399 = vst [vmem:[#allocation10] sm:$0x1] %v398
    // Predicated region
    $region34: #{tpu_custom_call.1} parent=1 // pred_check
      _
    $region35: #{tpu_custom_call.1} parent=1 // pred_check_branch
      %401 = sbr.rel (0) target = $region37
    $region36: #{tpu_custom_call.1} parent=1 // pred_region
      %s403 = ssub.s32 16, 16
      %404 = vsyncadd [#allocation4], %s403
      %s406 = sshll.u32 [#allocation10], 4
      %s407 = int_to_ptr.vmem [resolvable:$true] %s406
      %409 = dma.vmem_to_hbm [thread:$0]  %s407, 16, %s4, [#allocation4]
    $region37: #{tpu_custom_call.1} parent=1 // pred_fallthru
      _
    // Predicated region
    $region38: #{tpu_custom_call.1} parent=1 // pred_check
      _
    $region39: #{tpu_custom_call.1} parent=1 // pred_check_branch
      %411 = sbr.rel (0) target = $region41
    $region40: #{tpu_custom_call.1} parent=1 // pred_region
      %412 = dma.done [#allocation4], 16
    $region41: #{tpu_custom_call.1} parent=1 // pred_fallthru
      _
    %413 = vsyncpa [#allocation3], 1
    %414 = vsyncpa [#allocation6], 1
    %415 = vsyncpa [#allocation9], 1
    %416 = vsyncpa [#allocation4], 1

</llo_original>
